<compile_context>
chip_gen: v7x
topology: tpu7x:2x2x1
jax: 0.10.0
libtpu: 0.0.40
codegen_flags: <defaults>
</compile_context>

<pallas_src>
import functools

import jax
import jax.numpy as jnp
from jax.experimental import pallas as pl
from jax.experimental.pallas import tpu as pltpu


# ----------------------------------------------------------------------------
# Pallas kernel: the NodeClasLayer MLP hot path (3 matmuls + 2 ReLUs)
# ----------------------------------------------------------------------------
def nodeclas_mlp_kernel(x_ref, w1_ref, b1_ref, w2_ref, b2_ref, w3_ref, b3_ref,
                        out_ref):
    # x tile and weights arrive as bf16 (native MXU dtype); accumulate in f32
    # and keep the bias-add / ReLU in f32 (v5e's VPU has no bf16 path).
    x = x_ref[...]                                              # [TE, F] bf16
    h = jnp.dot(x, w1_ref[...], preferred_element_type=jnp.float32)
    h = jnp.maximum(h + b1_ref[...], 0.0)                       # fc1 + ReLU (f32)
    h = jnp.dot(h.astype(jnp.bfloat16), w2_ref[...],
                preferred_element_type=jnp.float32)
    h = jnp.maximum(h + b2_ref[...], 0.0)                       # fc2 + ReLU (f32)
    # Final layer computed transposed:  [C, H2] x [TE, H2] (contract H2) -> [C, TE]
    # so the logits block is lane-dense (TE rides the 128-lane axis -> full vst).
    o = jax.lax.dot_general(
        w3_ref[...], h.astype(jnp.bfloat16),
        dimension_numbers=(((1,), (1,)), ((), ())),
        preferred_element_type=jnp.float32)
    C = out_ref.shape[0]
    if C == 1:
        o = o + b3_ref[0, 0]                 # SMEM scalar -> free VPU broadcast
    else:
        b3v = jnp.concatenate(
            [b3_ref[c, 0].reshape(1, 1) for c in range(C)], axis=0)  # [C, 1]
        o = o + b3v
    out_ref[...] = o.astype(out_ref.dtype)


# ----------------------------------------------------------------------------
# Tiling / VMEM helpers
# ----------------------------------------------------------------------------
def _round_up(x, m):
    return -(-x // m) * m


def _tpu_vmem_capacity_bytes():
    try:
        return int(pltpu.get_tpu_info().vmem_capacity_bytes)
    except Exception:
        return 64 << 20          # conservative: assume v7x-sized VMEM per TC


def _scoped_vmem_cap_bytes(physical_bytes):
    # Leave headroom for compiler-internal scratch / pipeline buffers:
    # <= 48 MiB on v7x (64 MiB physical per TC), <= 96 MiB on v5e/v6e (128 MiB).
    return (48 << 20) if physical_bytes <= (64 << 20) else (96 << 20)


def _choose_tile_e(E, requested, bytes_per_row, x_stream_budget_bytes,
                   target_steps=8):
    """Edge-row tile: big enough to amortize per-step overhead (~0.35us), small
    enough that (a) the grid has >= target_steps steps for DMA/compute overlap
    and v7x 2-TensorCore load balance, and (b) double-buffered x tiles fit the
    VMEM budget.  Multiples of 128 keep the transposed logits store lane-dense.
    """
    if E <= 128:
        return max(E, 1)                       # single full-extent tile
    balanced = _round_up(pl.cdiv(E, target_steps), 128)
    tile = min(max(requested, 128), balanced)
    tile = max(128, (tile // 128) * 128)
    cap = x_stream_budget_bytes // (2 * max(bytes_per_row, 1))
    cap = max(128, (cap // 128) * 128)
    tile = min(tile, cap)
    return E if tile >= E else tile


def _vmem_limit_bytes(te, F, H1, H2, C, cap):
    x_stream = 2 * (te * F * 2)                       # bf16 x tile, 2 buffers
    out_stream = 2 * (te * max(C, 1) * 4)             # f32 logits^T, 2 buffers
    weights = 2 * 2 * (F * H1 + H1 * H2 + C * H2)     # bf16 weights, 2 buffers
    biases = 2 * 4 * (H1 + H2)
    interm = 4 * te * (H1 + H2 + C)                   # f32 intermediates
    est = x_stream + out_stream + weights + biases + interm
    return int(min(max(2 * est + (8 << 20), 32 << 20), cap))


# ----------------------------------------------------------------------------
# Wrapper: tiled pallas_call (no padding copy; partial trailing block)
# ----------------------------------------------------------------------------
def nodeclas_mlp(node_emb, params, *, tile_e=1024):
    """NodeClasLayer MLP on edge embeddings [E, F] -> transposed logits [C, E]."""
    w1, b1, w2, b2, w3, b3 = params
    E, F = node_emb.shape
    H1 = w1.shape[1]
    H2 = w2.shape[1]
    C = w3.shape[0]

    physical = _tpu_vmem_capacity_bytes()
    cap = _scoped_vmem_cap_bytes(physical)

    bytes_per_row = 2 * F + 4 * (H1 + H2 + C)          # bf16 x row + f32 interm.
    te = _choose_tile_e(E, tile_e, bytes_per_row, cap // 2)
    # No jnp.pad: Pallas pads the trailing partial block on read and only
    # writes back the in-range logits columns (safe: no reduction across E).
    grid = (pl.cdiv(E, te),)

    # bf16 operands (f32 accumulation in-kernel): halves x/weight DMA bytes and
    # hits the native bf16 MXU on every generation.  node_emb itself stays f32
    # for the caller; XLA fuses this cast with the gather that produced it.
    x16 = node_emb.astype(jnp.bfloat16)
    w1b = w1.astype(jnp.bfloat16)
    w2b = w2.astype(jnp.bfloat16)
    w3b = w3.astype(jnp.bfloat16)

    const = lambda i: (0, 0)  # weights/biases: one resident block, reused each step
    # TODO(synk): mark the constant weight/bias operands single-buffered
    # (pipeline_mode) or hoist them into once-loaded scratch; only matters for
    # very wide F on v7x's 64 MiB VMEM, so left on the default pipeline here.

    logits_t = pl.pallas_call(
        nodeclas_mlp_kernel,
        out_shape=jax.ShapeDtypeStruct((C, E), jnp.float32),
        grid_spec=pltpu.PrefetchScalarGridSpec(
            num_scalar_prefetch=0,
            grid=grid,
            in_specs=[
                pl.BlockSpec((te, F), lambda i: (i, 0)),   # x tile (edge rows), bf16
                pl.BlockSpec((F, H1), const),              # W1  [in, out]  bf16
                pl.BlockSpec((1, H1), const),              # b1  f32
                pl.BlockSpec((H1, H2), const),             # W2  [in, out]  bf16
                pl.BlockSpec((1, H2), const),              # b2  f32
                pl.BlockSpec((C, H2), const),              # W3  [out, in]  bf16
                pl.BlockSpec(memory_space=pltpu.MemorySpace.SMEM),  # b3 scalar(s)
            ],
            out_specs=pl.BlockSpec((C, te), lambda i: (0, i)),  # lane-dense logits^T
        ),
        compiler_params=pltpu.CompilerParams(
            dimension_semantics=("parallel",),   # edge tiles shard across v7x cores
            vmem_limit_bytes=_vmem_limit_bytes(te, F, H1, H2, C, cap),
        ),
    )(x16, w1b, b1, w2b, b2, w3b, b3)

    return logits_t                                              # [C, E]


# ----------------------------------------------------------------------------
# Parameter construction (deterministic, mirrors NodeClasLayer.__init__)
# ----------------------------------------------------------------------------
def xavier_normal_io(key, fan_in, fan_out):
    std = jnp.sqrt(2.0 / (fan_in + fan_out))
    # stored as [in, out] (transposed vs torch's [out, in]) so the kernel does x @ W
    return std * jax.random.normal(key, (fan_in, fan_out), dtype=jnp.float32)


def xavier_normal_oi(key, fan_in, fan_out):
    std = jnp.sqrt(2.0 / (fan_in + fan_out))
    # torch layout [out, in]; the kernel contracts its last dim against H2
    return std * jax.random.normal(key, (fan_out, fan_in), dtype=jnp.float32)


def linear_bias(key, fan_in, shape):
    bound = 1.0 / jnp.sqrt(jnp.float32(fan_in))
    return jax.random.uniform(key, shape, minval=-bound, maxval=bound,
                              dtype=jnp.float32)


def make_nodeclas_params(key, in_dim, class_dim=1):
    hidden = in_dim // 2
    hidden2 = hidden // 2
    k = jax.random.split(key, 6)
    w1 = xavier_normal_io(k[0], in_dim, hidden)        # [in, out]
    b1 = linear_bias(k[1], in_dim, (1, hidden))
    w2 = xavier_normal_io(k[2], hidden, hidden2)       # [in, out]
    b2 = linear_bias(k[3], hidden, (1, hidden2))
    w3 = xavier_normal_oi(k[4], hidden2, class_dim)    # [out, in]
    b3 = linear_bias(k[5], hidden2, (class_dim, 1))
    return (w1, b1, w2, b2, w3, b3)


# ----------------------------------------------------------------------------
# Decoder forward (NC task, no fraud_graph): gather (glue) + Pallas MLP
# ----------------------------------------------------------------------------
@functools.partial(jax.jit, static_argnames=("tile_e",))
def decoder_forward(block_outputs, edge_src, edge_labels, params, tile_e=1024):
    # fn.copy_u('feat','emb'): gather source-node features onto edges (glue).
    # TODO(synk): for wide embeddings (>= ~512 f32 features) fuse this gather
    # into the kernel (scalar-prefetched edge_src + per-row DMA gather from a
    # pl.ANY block_outputs ref, emitting node_emb as a second output) to drop
    # the kernel's E*F re-read; below that width the per-row DMA descriptors
    # are too small and the XLA gather wins, so it stays in XLA.
    node_emb = jnp.take(block_outputs, edge_src, axis=0)           # [E, F] f32
    logits_t = nodeclas_mlp(node_emb, params, tile_e=tile_e)       # [C, E]
    logits = logits_t.T                                            # [E, C] torch layout
    # matches torch: logits.squeeze(), labels.squeeze(), node_emb.squeeze()
    return jnp.squeeze(logits), jnp.squeeze(edge_labels), jnp.squeeze(node_emb)


# Pure-JAX references for correctness checking.
def reference_forward(block_outputs, edge_src, edge_labels, params):
    w1, b1, w2, b2, w3, b3 = params
    node_emb = jnp.take(block_outputs, edge_src, axis=0)
    h = jnp.maximum(node_emb @ w1 + b1, 0.0)
    h = jnp.maximum(h @ w2 + b2, 0.0)
    lg = h @ w3.T + b3.T
    return jnp.squeeze(lg), jnp.squeeze(edge_labels), jnp.squeeze(node_emb)


def reference_forward_bf16(block_outputs, edge_src, edge_labels, params):
    """Mirrors the kernel's dtype choices (bf16 operands, f32 accumulation)."""
    w1, b1, w2, b2, w3, b3 = params
    node_emb = jnp.take(block_outputs, edge_src, axis=0)
    x = node_emb.astype(jnp.bfloat16)
    w1b, w2b, w3b = (w.astype(jnp.bfloat16) for w in (w1, w2, w3))
    h = jnp.maximum(
        jnp.dot(x, w1b, preferred_element_type=jnp.float32) + b1, 0.0)
    h = jnp.maximum(
        jnp.dot(h.astype(jnp.bfloat16), w2b,
                preferred_element_type=jnp.float32) + b2, 0.0)
    lg = jnp.dot(h.astype(jnp.bfloat16), w3b.T,
                 preferred_element_type=jnp.float32) + b3.T
    return jnp.squeeze(lg), jnp.squeeze(edge_labels), jnp.squeeze(node_emb)


if __name__ == "__main__":
    key = jax.random.PRNGKey(0)
    k_feat, k_src, k_lab, k_par = jax.random.split(key, 4)

    N = 64          # nodes in the sampled block
    E = 200         # edges (NOT a multiple of the 128-row tile -> partial block)
    NFEAT = 32      # nfeat_dim -> hidden 16 -> 8 -> 1

    block_outputs = jax.random.normal(k_feat, (N, NFEAT), dtype=jnp.float32)
    edge_src = jax.random.randint(k_src, (E,), 0, N, dtype=jnp.int32)
    edge_labels = jax.random.randint(k_lab, (E,), 0, 2).astype(jnp.float32)

    params = make_nodeclas_params(k_par, NFEAT, class_dim=1)

    ref_logits32, ref_labels, ref_emb = reference_forward(
        block_outputs, edge_src, edge_labels, params)
    ref_logits16, _, _ = reference_forward_bf16(
        block_outputs, edge_src, edge_labels, params)

    # 1) default path: te=128 -> 2 grid steps, trailing block partially out-of-range
    logits, labels, node_emb = decoder_forward(
        block_outputs, edge_src, edge_labels, params)
    jax.block_until_ready((logits, labels, node_emb))
    assert logits.shape == (E,)
    assert labels.shape == (E,)
    assert node_emb.shape == (E, NFEAT)
    assert jnp.allclose(logits, ref_logits16, atol=1e-2, rtol=1e-2), \
        float(jnp.max(jnp.abs(logits - ref_logits16)))
    assert jnp.allclose(logits, ref_logits32, atol=8e-2, rtol=8e-2), \
        float(jnp.max(jnp.abs(logits - ref_logits32)))
    assert jnp.allclose(labels, ref_labels)
    assert jnp.allclose(node_emb, ref_emb)

    # 2) single-tile path (blocks == full extents; E not a multiple of 8/128)
    E2 = 100
    edge_src2 = jax.random.randint(k_src, (E2,), 0, N, dtype=jnp.int32)
    edge_labels2 = jax.random.randint(k_lab, (E2,), 0, 2).astype(jnp.float32)
    ref2_logits16, _, _ = reference_forward_bf16(
        block_outputs, edge_src2, edge_labels2, params)
    logits2, labels2, _ = decoder_forward(
        block_outputs, edge_src2, edge_labels2, params)
    jax.block_until_ready((logits2, labels2))
    assert logits2.shape == (E2,)
    assert jnp.allclose(logits2, ref2_logits16, atol=1e-2, rtol=1e-2)

    print("KERNEL_OK")
</pallas_src>

<mosaic_0001>
module attributes {stable_mosaic.version = 11 : i64} {
  func.func @nodeclas_mlp_kernel(%arg0: i32, %arg1: memref<128x32xbf16, #tpu.memory_space<vmem>>, %arg2: memref<32x16xbf16, #tpu.memory_space<vmem>>, %arg3: memref<1x16xf32, #tpu.memory_space<vmem>>, %arg4: memref<16x8xbf16, #tpu.memory_space<vmem>>, %arg5: memref<1x8xf32, #tpu.memory_space<vmem>>, %arg6: memref<1x8xbf16, #tpu.memory_space<vmem>>, %arg7: memref<1x1xf32, #tpu.memory_space<smem>>, %arg8: memref<1x128xf32, #tpu.memory_space<vmem>>) attributes {dimension_semantics = [#tpu.dimension_semantics<parallel>], iteration_bounds = array<i64: 2>, scalar_prefetch = 0 : i64, scratch_operands = 0 : i64, tpu.core_type = #tpu.core_type<tc>, window_params = [{transform_indices = @transform_0, window_bounds = array<i64: 128, 32>}, {pipeline_mode = #tpu.pipeline_mode<synchronous>, transform_indices = @transform_1, window_bounds = array<i64: 32, 16>}, {pipeline_mode = #tpu.pipeline_mode<synchronous>, transform_indices = @transform_2, window_bounds = array<i64: 1, 16>}, {pipeline_mode = #tpu.pipeline_mode<synchronous>, transform_indices = @transform_3, window_bounds = array<i64: 16, 8>}, {pipeline_mode = #tpu.pipeline_mode<synchronous>, transform_indices = @transform_4, window_bounds = array<i64: 1, 8>}, {pipeline_mode = #tpu.pipeline_mode<synchronous>, transform_indices = @transform_5, window_bounds = array<i64: 1, 8>}, {transform_indices = @transform_6, window_bounds = array<i64: 1, 1>}, {transform_indices = @transform_7, window_bounds = array<i64: 1, 128>}]} {
    %c0 = arith.constant 0 : index
    %c0_0 = arith.constant 0 : index
    %0 = vector.load %arg1[%c0, %c0_0] : memref<128x32xbf16, #tpu.memory_space<vmem>>, vector<128x32xbf16>
    %c0_1 = arith.constant 0 : index
    %c0_2 = arith.constant 0 : index
    %1 = vector.load %arg2[%c0_1, %c0_2] : memref<32x16xbf16, #tpu.memory_space<vmem>>, vector<32x16xbf16>
    %cst = arith.constant dense<0.000000e+00> : vector<128x16xf32>
    %2 = tpu.matmul %0, %1, %cst {dimension_numbers = #tpu.dot_dimension_numbers<[1], [0], [0], [1], [0, 0, 1, 1], [], []>} : vector<128x32xbf16>, vector<32x16xbf16>, vector<128x16xf32> -> vector<128x16xf32>
    %c0_3 = arith.constant 0 : index
    %c0_4 = arith.constant 0 : index
    %3 = vector.load %arg3[%c0_3, %c0_4] : memref<1x16xf32, #tpu.memory_space<vmem>>, vector<1x16xf32>
    %4 = vector.broadcast %3 : vector<1x16xf32> to vector<128x16xf32>
    %5 = arith.addf %2, %4 : vector<128x16xf32>
    %cst_5 = arith.constant 0.000000e+00 : f32
    %6 = vector.broadcast %cst_5 : f32 to vector<128x16xf32>
    %7 = arith.maximumf %5, %6 : vector<128x16xf32>
    %8 = arith.truncf %7 : vector<128x16xf32> to vector<128x16xbf16>
    %c0_6 = arith.constant 0 : index
    %c0_7 = arith.constant 0 : index
    %9 = vector.load %arg4[%c0_6, %c0_7] : memref<16x8xbf16, #tpu.memory_space<vmem>>, vector<16x8xbf16>
    %cst_8 = arith.constant dense<0.000000e+00> : vector<128x8xf32>
    %10 = tpu.matmul %8, %9, %cst_8 {dimension_numbers = #tpu.dot_dimension_numbers<[1], [0], [0], [1], [0, 0, 1, 1], [], []>} : vector<128x16xbf16>, vector<16x8xbf16>, vector<128x8xf32> -> vector<128x8xf32>
    %c0_9 = arith.constant 0 : index
    %c0_10 = arith.constant 0 : index
    %11 = vector.load %arg5[%c0_9, %c0_10] : memref<1x8xf32, #tpu.memory_space<vmem>>, vector<1x8xf32>
    %12 = vector.broadcast %11 : vector<1x8xf32> to vector<128x8xf32>
    %13 = arith.addf %10, %12 : vector<128x8xf32>
    %cst_11 = arith.constant 0.000000e+00 : f32
    %14 = vector.broadcast %cst_11 : f32 to vector<128x8xf32>
    %15 = arith.maximumf %13, %14 : vector<128x8xf32>
    %c0_12 = arith.constant 0 : index
    %c0_13 = arith.constant 0 : index
    %16 = vector.load %arg6[%c0_12, %c0_13] : memref<1x8xbf16, #tpu.memory_space<vmem>>, vector<1x8xbf16>
    %17 = arith.truncf %15 : vector<128x8xf32> to vector<128x8xbf16>
    %cst_14 = arith.constant dense<0.000000e+00> : vector<1x128xf32>
    %18 = tpu.matmul %16, %17, %cst_14 {dimension_numbers = #tpu.dot_dimension_numbers<[1], [1], [0], [0], [0, 0, 1, 0], [], []>} : vector<1x8xbf16>, vector<128x8xbf16>, vector<1x128xf32> -> vector<1x128xf32>
    %c0_15 = arith.constant 0 : index
    %c0_16 = arith.constant 0 : index
    %19 = memref.load %arg7[%c0_15, %c0_16] : memref<1x1xf32, #tpu.memory_space<smem>>
    %20 = vector.broadcast %19 : f32 to vector<1x128xf32>
    %21 = arith.addf %18, %20 : vector<1x128xf32>
    %c0_17 = arith.constant 0 : index
    %c0_18 = arith.constant 0 : index
    %22 = vector.load %arg8[%c0_17, %c0_18] : memref<1x128xf32, #tpu.memory_space<vmem>>, vector<1x128xf32>
    tpu.vector_store %arg8[%c0_17, %c0_18], %21 {strides = array<i32>} : memref<1x128xf32, #tpu.memory_space<vmem>>, vector<1x128xf32>,
    return
  }
  func.func @transform_0(%arg0: i32) -> (i32, i32) {
    %c0_i32 = arith.constant 0 : i32
    %c0_i32_0 = arith.constant 0 : i32
    return %arg0, %c0_i32 : i32, i32
  }
  func.func @transform_1(%arg0: i32) -> (i32, i32) {
    %c0_i32 = arith.constant 0 : i32
    %c0_i32_0 = arith.constant 0 : i32
    %c0_i32_1 = arith.constant 0 : i32
    return %c0_i32, %c0_i32_0 : i32, i32
  }
  func.func @transform_2(%arg0: i32) -> (i32, i32) {
    %c0_i32 = arith.constant 0 : i32
    %c0_i32_0 = arith.constant 0 : i32
    %c0_i32_1 = arith.constant 0 : i32
    return %c0_i32, %c0_i32_0 : i32, i32
  }
  func.func @transform_3(%arg0: i32) -> (i32, i32) {
    %c0_i32 = arith.constant 0 : i32
    %c0_i32_0 = arith.constant 0 : i32
    %c0_i32_1 = arith.constant 0 : i32
    return %c0_i32, %c0_i32_0 : i32, i32
  }
  func.func @transform_4(%arg0: i32) -> (i32, i32) {
    %c0_i32 = arith.constant 0 : i32
    %c0_i32_0 = arith.constant 0 : i32
    %c0_i32_1 = arith.constant 0 : i32
    return %c0_i32, %c0_i32_0 : i32, i32
  }
  func.func @transform_5(%arg0: i32) -> (i32, i32) {
    %c0_i32 = arith.constant 0 : i32
    %c0_i32_0 = arith.constant 0 : i32
    %c0_i32_1 = arith.constant 0 : i32
    return %c0_i32, %c0_i32_0 : i32, i32
  }
  func.func @transform_6(%arg0: i32) -> (i32, i32) {
    %c0_i32 = arith.constant 0 : i32
    %c0_i32_0 = arith.constant 0 : i32
    %c0_i32_1 = arith.constant 0 : i32
    return %c0_i32, %c0_i32_0 : i32, i32
  }
  func.func @transform_7(%arg0: i32) -> (i32, i32) {
    %c0_i32 = arith.constant 0 : i32
    %c0_i32_0 = arith.constant 0 : i32
    return %c0_i32, %arg0 : i32, i32
  }
}

</mosaic_0001>

<llo_original>
// kernel: decoder_forward.1
$region0: #{decoder_forward.1}
  #allocation0 [shape = 'u32[]', space=smem, size = 0x4, offset = 0x4, fixed_abs, tag = 'smem constant byte address 0x4 - core index']
  #allocation1 [shape = 'u32[144,128]{1,0:T(1,128)}', space=vmem, size = 0x12000, scoped, tag = 'internal scratch']
  #allocation2 [shape = 'f32[1,1]{1,0:T(1,128)S(6)}', space=smem, size = 0x200, scoped, tag = 'scoped memory for decoder_forward.1']
  %s0 = inlined_call_operand.vmem [shape: bf16[200,32], index: 0, kind: input, shape index: {}]
  %s1 = inlined_call_operand.vmem [shape: bf16[32,16], index: 1, kind: input, shape index: {}]
  %s2 = inlined_call_operand.vmem [shape: f32[1,16], index: 2, kind: input, shape index: {}]
  %s3 = inlined_call_operand.vmem [shape: bf16[16,8], index: 3, kind: input, shape index: {}]
  %s4 = inlined_call_operand.vmem [shape: f32[1,8], index: 4, kind: input, shape index: {}]
  %s5 = inlined_call_operand.vmem [shape: bf16[1,8], index: 5, kind: input, shape index: {}]
  %s6 = inlined_call_operand.<no memory space> [shape: f32[1,1], index: 6, kind: input, shape index: {}]
  %s7 = inlined_call_operand.hbm [shape: f32[1,200], index: 7, kind: output, shape index: {}]
  %s8 = sld [smem:[#allocation0]]
  $region61: #{decoder_forward.1} parent=0
    _
  %s10 = ssub.s32 1, %s8
  %s11 = scalar_select 0, %s10, %s8
  %12 = sst [smem:[#allocation2]] %s6
  $region1: #{decoder_forward.1} parent=0
    #allocation3 [shape = 'u8[1024]{0}', space=vmem, size = 0x400, scoped, tag = 'output window, operand 0']
    #allocation4 [shape = 's32[2]{0}', space=sflag, size = 0x8, scoped, tag = 'scoped memory for decoder_forward.1']
    %13 = vsyncpa [#allocation4], 0
    %s14 = scalar_lea.sflag [#allocation4], 1
    %15 = vsyncpa %s14, 0
    loop: start=0, step=1, limit=4
    $region2: #{decoder_forward.1} parent=1 // loop_pre_header
      _
    $region3: #{decoder_forward.1} parent=1 // loop_header
      %s17 = sphi 0, %s21
      %p18 = scmp.ge.s32.totalorder %s17, 4
      %s27 = sphi 0, %s29
      %s30 = sphi 0, %s27
      %s31 = sphi 0, %s30
      %s47 = sphi 0, %s31
      %s51 = sphi 0, %s51
      %s53 = sphi 0, %s51
      %s54 = sphi 0, %s53
      %s68 = sphi 0, %s54
      %s72 = sphi 0, %s72
      %s74 = sphi 0, %s72
      %s75 = sphi 0, %s74
      %s89 = sphi 0, %s75
      %s93 = sphi 0, %s93
      %s95 = sphi 0, %s93
      %s96 = sphi 0, %s95
      %s110 = sphi 0, %s96
      %s114 = sphi 0, %s114
      %s116 = sphi 0, %s114
      %s117 = sphi 0, %s116
      %s131 = sphi 0, %s117
      %s135 = sphi 0, %s135
      %s137 = sphi 0, %s135
      %s138 = sphi 0, %s137
      %s152 = sphi 0, %s138
      %s156 = sphi 0, %s156
      %s158 = sphi 0, %s156
      %s159 = sphi 0, %s158
      %s173 = sphi 0, %s159
      %s179 = sphi 0, %s181
      %s182 = sphi 0, %s179
      %s183 = sphi 0, %s182
      %s199 = sphi 0, %s183
    $region4: #{decoder_forward.1} parent=1 // loop_header_branch
      %20 = sbr.rel (%p18) target = $region8
    $region5: #{decoder_forward.1} parent=1 // loop_body
      %s22 = ssub.s32 %s17, 1
      %s23 = ssub.s32 %s17, 2
      %s24 = sadd.s32 %s17, 1
      %s25 = ssub.s32 %s17, %s24
      %p26 = scmp.eq.s32.totalorder %s25, 0
      %s28 = sadd.s32 %s27, 1
      %s29 = scalar_select %p26, %s27, %s28
      %p32 = pneg %p26
      %p33 = scmp.eq.s32.totalorder %s17, 1
      %p34 = por %p32, %p33
      %p35 = scmp.ne.s32.totalorder %s27, %s30
      %p36 = scmp.eq.s32.totalorder %s17, 0
      %p37 = por %p35, %p36
      %p38 = scmp.ne.s32.totalorder %s27, %s30
      %p39 = scmp.eq.s32.totalorder %s22, 1
      %p40 = por %p38, %p39
      %p41 = scmp.ne.s32.totalorder %s30, %s31
      %p42 = scmp.eq.s32.totalorder %s22, 0
      %p43 = por %p41, %p42
      %p44 = scmp.ne.s32.totalorder %s30, %s31
      %p45 = scmp.eq.s32.totalorder %s23, 1
      %p46 = por %p44, %p45
      %p48 = scmp.ne.s32.totalorder %s31, %s47
      %p49 = scmp.eq.s32.totalorder %s23, 0
      %p50 = por %p48, %p49
      %s52 = sadd.s32 %s51, 1
      %p55 = scmp.eq.s32.totalorder %s17, 1
      %p56 = scmp.ne.s32.totalorder %s51, %s53
      %p57 = scmp.eq.s32.totalorder %s17, 0
      %p58 = por %p56, %p57
      %p59 = scmp.ne.s32.totalorder %s51, %s53
      %p60 = scmp.eq.s32.totalorder %s22, 1
      %p61 = por %p59, %p60
      %p62 = scmp.ne.s32.totalorder %s53, %s54
      %p63 = scmp.eq.s32.totalorder %s22, 0
      %p64 = por %p62, %p63
      %p65 = scmp.ne.s32.totalorder %s53, %s54
      %p66 = scmp.eq.s32.totalorder %s23, 1
      %p67 = por %p65, %p66
      %p69 = scmp.ne.s32.totalorder %s54, %s68
      %p70 = scmp.eq.s32.totalorder %s23, 0
      %p71 = por %p69, %p70
      %s73 = sadd.s32 %s72, 1
      %p76 = scmp.eq.s32.totalorder %s17, 1
      %p77 = scmp.ne.s32.totalorder %s72, %s74
      %p78 = scmp.eq.s32.totalorder %s17, 0
      %p79 = por %p77, %p78
      %p80 = scmp.ne.s32.totalorder %s72, %s74
      %p81 = scmp.eq.s32.totalorder %s22, 1
      %p82 = por %p80, %p81
      %p83 = scmp.ne.s32.totalorder %s74, %s75
      %p84 = scmp.eq.s32.totalorder %s22, 0
      %p85 = por %p83, %p84
      %p86 = scmp.ne.s32.totalorder %s74, %s75
      %p87 = scmp.eq.s32.totalorder %s23, 1
      %p88 = por %p86, %p87
      %p90 = scmp.ne.s32.totalorder %s75, %s89
      %p91 = scmp.eq.s32.totalorder %s23, 0
      %p92 = por %p90, %p91
      %s94 = sadd.s32 %s93, 1
      %p97 = scmp.eq.s32.totalorder %s17, 1
      %p98 = scmp.ne.s32.totalorder %s93, %s95
      %p99 = scmp.eq.s32.totalorder %s17, 0
      %p100 = por %p98, %p99
      %p101 = scmp.ne.s32.totalorder %s93, %s95
      %p102 = scmp.eq.s32.totalorder %s22, 1
      %p103 = por %p101, %p102
      %p104 = scmp.ne.s32.totalorder %s95, %s96
      %p105 = scmp.eq.s32.totalorder %s22, 0
      %p106 = por %p104, %p105
      %p107 = scmp.ne.s32.totalorder %s95, %s96
      %p108 = scmp.eq.s32.totalorder %s23, 1
      %p109 = por %p107, %p108
      %p111 = scmp.ne.s32.totalorder %s96, %s110
      %p112 = scmp.eq.s32.totalorder %s23, 0
      %p113 = por %p111, %p112
      %s115 = sadd.s32 %s114, 1
      %p118 = scmp.eq.s32.totalorder %s17, 1
      %p119 = scmp.ne.s32.totalorder %s114, %s116
      %p120 = scmp.eq.s32.totalorder %s17, 0
      %p121 = por %p119, %p120
      %p122 = scmp.ne.s32.totalorder %s114, %s116
      %p123 = scmp.eq.s32.totalorder %s22, 1
      %p124 = por %p122, %p123
      %p125 = scmp.ne.s32.totalorder %s116, %s117
      %p126 = scmp.eq.s32.totalorder %s22, 0
      %p127 = por %p125, %p126
      %p128 = scmp.ne.s32.totalorder %s116, %s117
      %p129 = scmp.eq.s32.totalorder %s23, 1
      %p130 = por %p128, %p129
      %p132 = scmp.ne.s32.totalorder %s117, %s131
      %p133 = scmp.eq.s32.totalorder %s23, 0
      %p134 = por %p132, %p133
      %s136 = sadd.s32 %s135, 1
      %p139 = scmp.eq.s32.totalorder %s17, 1
      %p140 = scmp.ne.s32.totalorder %s135, %s137
      %p141 = scmp.eq.s32.totalorder %s17, 0
      %p142 = por %p140, %p141
      %p143 = scmp.ne.s32.totalorder %s135, %s137
      %p144 = scmp.eq.s32.totalorder %s22, 1
      %p145 = por %p143, %p144
      %p146 = scmp.ne.s32.totalorder %s137, %s138
      %p147 = scmp.eq.s32.totalorder %s22, 0
      %p148 = por %p146, %p147
      %p149 = scmp.ne.s32.totalorder %s137, %s138
      %p150 = scmp.eq.s32.totalorder %s23, 1
      %p151 = por %p149, %p150
      %p153 = scmp.ne.s32.totalorder %s138, %s152
      %p154 = scmp.eq.s32.totalorder %s23, 0
      %p155 = por %p153, %p154
      %s157 = sadd.s32 %s156, 1
      %p160 = scmp.eq.s32.totalorder %s17, 1
      %p161 = scmp.ne.s32.totalorder %s156, %s158
      %p162 = scmp.eq.s32.totalorder %s17, 0
      %p163 = por %p161, %p162
      %p164 = scmp.ne.s32.totalorder %s156, %s158
      %p165 = scmp.eq.s32.totalorder %s22, 1
      %p166 = por %p164, %p165
      %p167 = scmp.ne.s32.totalorder %s158, %s159
      %p168 = scmp.eq.s32.totalorder %s22, 0
      %p169 = por %p167, %p168
      %p170 = scmp.ne.s32.totalorder %s158, %s159
      %p171 = scmp.eq.s32.totalorder %s23, 1
      %p172 = por %p170, %p171
      %p174 = scmp.ne.s32.totalorder %s159, %s173
      %p175 = scmp.eq.s32.totalorder %s23, 0
      %p176 = por %p174, %p175
      %s177 = ssub.s32 %s17, %s24
      %p178 = scmp.eq.s32.totalorder %s177, 0
      %s180 = sadd.s32 %s179, 1
      %s181 = scalar_select %p178, %s179, %s180
      %p184 = pneg %p178
      %p185 = scmp.eq.s32.totalorder %s17, 1
      %p186 = por %p184, %p185
      %p187 = scmp.ne.s32.totalorder %s179, %s182
      %p188 = scmp.eq.s32.totalorder %s17, 0
      %p189 = por %p187, %p188
      %p190 = scmp.ne.s32.totalorder %s179, %s182
      %p191 = scmp.eq.s32.totalorder %s22, 1
      %p192 = por %p190, %p191
      %p193 = scmp.ne.s32.totalorder %s182, %s183
      %p194 = scmp.eq.s32.totalorder %s22, 0
      %p195 = por %p193, %p194
      %p196 = scmp.ne.s32.totalorder %s182, %s183
      %p197 = scmp.eq.s32.totalorder %s23, 1
      %p198 = por %p196, %p197
      %p200 = scmp.ne.s32.totalorder %s183, %s199
      %p201 = scmp.eq.s32.totalorder %s23, 0
      %p202 = por %p200, %p201
      %p203 = scmp.le.s32.totalorder 1, %s17
      %p204 = scmp.lt.s32.totalorder %s17, 3
      %p205 = pnand %p203, %p204
      %p206 = pneg %p205
      // Predicated region
      $region9: #{decoder_forward.1} parent=5 // pred_check
        _
      $region10: #{decoder_forward.1} parent=5 // pred_check_branch
        %208 = sbr.rel (%p205) target = $region12
      $region11: #{decoder_forward.1} parent=5 // pred_region
        %s209 = ssub.s32 %s17, 1
        // Predicated region
        $region13: #{decoder_forward.1} parent=11 // pred_check
          %p210 = pneg %p64
        $region14: #{decoder_forward.1} parent=11 // pred_check_branch
          %212 = sbr.rel (%p210) target = $region16
        $region15: #{decoder_forward.1} parent=11 // pred_region
          _
        $region16: #{decoder_forward.1} parent=11 // pred_fallthru
          _
        // Predicated region
        $region17: #{decoder_forward.1} parent=11 // pred_check
          %p213 = pneg %p85
        $region18: #{decoder_forward.1} parent=11 // pred_check_branch
          %215 = sbr.rel (%p213) target = $region20
        $region19: #{decoder_forward.1} parent=11 // pred_region
          _
        $region20: #{decoder_forward.1} parent=11 // pred_fallthru
          _
        // Predicated region
        $region21: #{decoder_forward.1} parent=11 // pred_check
          %p216 = pneg %p106
        $region22: #{decoder_forward.1} parent=11 // pred_check_branch
          %218 = sbr.rel (%p216) target = $region24
        $region23: #{decoder_forward.1} parent=11 // pred_region
          _
        $region24: #{decoder_forward.1} parent=11 // pred_fallthru
          _
        // Predicated region
        $region25: #{decoder_forward.1} parent=11 // pred_check
          %p219 = pneg %p127
        $region26: #{decoder_forward.1} parent=11 // pred_check_branch
          %221 = sbr.rel (%p219) target = $region28
        $region27: #{decoder_forward.1} parent=11 // pred_region
          _
        $region28: #{decoder_forward.1} parent=11 // pred_fallthru
          _
        // Predicated region
        $region29: #{decoder_forward.1} parent=11 // pred_check
          %p222 = pneg %p148
        $region30: #{decoder_forward.1} parent=11 // pred_check_branch
          %224 = sbr.rel (%p222) target = $region32
        $region31: #{decoder_forward.1} parent=11 // pred_region
          _
        $region32: #{decoder_forward.1} parent=11 // pred_fallthru
          _
        // Predicated region
        $region33: #{decoder_forward.1} parent=11 // pred_check
          %p225 = pneg %p169
        $region34: #{decoder_forward.1} parent=11 // pred_check_branch
          %227 = sbr.rel (%p225) target = $region36
        $region35: #{decoder_forward.1} parent=11 // pred_region
          _
        $region36: #{decoder_forward.1} parent=11 // pred_fallthru
          _
      $region12: #{decoder_forward.1} parent=5 // pred_fallthru
        _
      %p228 = scmp.lt.s32.totalorder %s17, 2
      // Predicated region
      $region37: #{decoder_forward.1} parent=5 // pred_check
        %p229 = pneg %p228
      $region38: #{decoder_forward.1} parent=5 // pred_check_branch
        %231 = sbr.rel (%p229) target = $region40
      $region39: #{decoder_forward.1} parent=5 // pred_region
        // Predicated region
        $region41: #{decoder_forward.1} parent=39 // pred_check
          %p232 = pneg %p37
        $region42: #{decoder_forward.1} parent=39 // pred_check_branch
          %234 = sbr.rel (%p232) target = $region44
        $region43: #{decoder_forward.1} parent=39 // pred_region
          %s235 = smul.u32 16, %s17
          %s236 = ssub.s32 25, %s235
          %p237 = scmp.lt.s32.totalorder %s236, 16
          %s238 = scalar_select %p237, %s236, 16
          %s239 = smul.u32 64, %s238
          %p240 = scmp.lt.s32.totalorder %s235, 24
          %s241 = scalar_select %p240, %s235, 24
          %s242 = smul.addr %s241, 4
          %s243 = scalar_lea.vmem %s0, %s242
          %s244 = smul.u32 16, %s17
          %s245 = ssub.s32 25, %s244
          %p246 = scmp.lt.s32.totalorder %s245, 16
          %s247 = scalar_select %p246, %s245, 16
          %s248 = smul.u32 64, %s247
        $region44: #{decoder_forward.1} parent=39 // pred_fallthru
          _
      $region40: #{decoder_forward.1} parent=5 // pred_fallthru
        _
      %p249 = scmp.le.s32.totalorder 1, %s17
      %p250 = scmp.lt.s32.totalorder %s17, 3
      %p251 = pnand %p249, %p250
      %p252 = pneg %p251
      // Predicated region
      $region45: #{decoder_forward.1} parent=5 // pred_check
        _
      $region46: #{decoder_forward.1} parent=5 // pred_check_branch
        %254 = sbr.rel (%p251) target = $region48
      $region47: #{decoder_forward.1} parent=5 // pred_region
        %s255 = ssub.s32 %s17, 1
        %s256 = smul.u32 16, %s22
        %s257 = ssub.s32 25, %s256
        %p258 = scmp.lt.s32.totalorder %s257, 16
        %s259 = scalar_select %p258, %s257, 16
        %s260 = smul.u32 64, %s259
        %p261 = scmp.lt.s32.totalorder %s256, 24
        %s262 = scalar_select %p261, %s256, 24
        %s263 = smul.addr %s262, 4
        %s264 = scalar_lea.vmem %s0, %s263
        %p265 = pneg %p43
        %p266 = pneg %p40
        %p267 = pneg %p64
        %p268 = pneg %p61
        %p269 = pneg %p85
        %p270 = pneg %p82
        %p271 = pneg %p106
        %p272 = pneg %p103
        %p273 = pneg %p127
        %p274 = pneg %p124
        %p275 = pneg %p148
        %p276 = pneg %p145
        %p277 = pneg %p169
        %p278 = pneg %p166
        %p279 = pneg %p195
        %p280 = pneg %p192
        %s281 = sand.u32 %s182, 1
        %s282 = scalar_lea.sflag [#allocation4], %s281
        %s283 = sand.u32 %s182, 1
        %s284 = scalar_lea.vmem [#allocation3], %s283
        %s285 = smul.u32 16, %s22
        %s286 = ssub.s32 25, %s285
        %p287 = scmp.lt.s32.totalorder %s286, 16
        %s288 = scalar_select %p287, %s286, 16
        %s289 = smul.u32 64, %s288
        %p290 = scmp.lt.s32.totalorder %s285, 24
        %s291 = scalar_select %p290, %s285, 24
        %s292 = smul.addr %s291, 4
        %s293 = scalar_lea.vmem %s0, %s292
        %s294 = smul.u32 16, %s22
        %s295 = ssub.s32 25, %s294
        %p296 = scmp.lt.s32.totalorder %s295, 16
        %s297 = scalar_select %p296, %s295, 16
        %s298 = smul.u32 64, %s297
        %v300 = vld [vmem:[%s293] sm:$0xf]
        %v301 = vld [vmem:[%s293 + $0x4] sm:$0xf]
        %v302 = vld [vmem:[%s293 + $0x8] sm:$0xf]
        %v303 = vld [vmem:[%s293 + $0xc] sm:$0xf]
        %v304 = vld [vmem:[%s293 + $0x10] sm:$0xf]
        %v305 = vld [vmem:[%s293 + $0x14] sm:$0xf]
        %v306 = vld [vmem:[%s293 + $0x18] sm:$0xf]
        %v307 = vld [vmem:[%s293 + $0x1c] sm:$0xf]
        %v308 = vld [vmem:[%s293 + $0x20] sm:$0xf]
        %v309 = vld [vmem:[%s293 + $0x24] sm:$0xf]
        %v310 = vld [vmem:[%s293 + $0x28] sm:$0xf]
        %v311 = vld [vmem:[%s293 + $0x2c] sm:$0xf]
        %v312 = vld [vmem:[%s293 + $0x30] sm:$0xf]
        %v313 = vld [vmem:[%s293 + $0x34] sm:$0xf]
        %v314 = vld [vmem:[%s293 + $0x38] sm:$0xf]
        %v315 = vld [vmem:[%s293 + $0x3c] sm:$0xf]
        %v316 = vld [vmem:[%s1] sm:$0xf]
        %v317 = vld [vmem:[%s1 + $0x4] sm:$0xf]
        %v318 = vld [vmem:[%s1 + $0x8] sm:$0xf]
        %v319 = vld [vmem:[%s1 + $0xc] sm:$0xf]
        %v320 = vld [vmem:[%s2] sm:$0x1]
        %v322 = vlaneseq
        %v323 = vshrl.u32 %v322, 7
        %v324 = vsub.s32 0, %v323
        %v325 = vrot.slane %v320, %v324
        %v343 = vunpack.c.l.b16 %v300
        %v344 = vunpack.c.l.b16 %v301
        %v345 = vunpack.c.l.b16 %v302
        %v346 = vunpack.c.l.b16 %v303
        %v347 = vunpack.c.l.b16 %v304
        %v348 = vunpack.c.l.b16 %v305
        %v349 = vunpack.c.l.b16 %v306
        %v350 = vunpack.c.l.b16 %v307
        %v351 = vunpack.c.l.b16 %v308
        %v352 = vunpack.c.l.b16 %v309
        %v353 = vunpack.c.l.b16 %v310
        %v354 = vunpack.c.l.b16 %v311
        %v355 = vunpack.c.l.b16 %v312
        %v356 = vunpack.c.l.b16 %v313
        %v357 = vunpack.c.l.b16 %v314
        %v358 = vunpack.c.l.b16 %v315
        %v359 = vpack.c.b16 %v344, %v343
        %v360 = vpack.c.b16 %v346, %v345
        %v361 = vpack.c.b16 %v348, %v347
        %v362 = vpack.c.b16 %v350, %v349
        %v363 = vpack.c.b16 %v352, %v351
        %v364 = vpack.c.b16 %v354, %v353
        %v365 = vpack.c.b16 %v356, %v355
        %v366 = vpack.c.b16 %v358, %v357
        %v371 = vunpack.c.l.b16 %v316
        %v372 = vunpack.c.l.b16 %v317
        %v373 = vunpack.c.l.b16 %v318
        %v374 = vunpack.c.l.b16 %v319
        %v375 = vpack.c.b16 %v372, %v371
        %v376 = vpack.c.b16 %v374, %v373
        %vm379 = vcmask 261120
        %v381 = vsel %vm379, %v359, 0
        %v384 = vsel %vm379, %v360, 0
        %v387 = vsel %vm379, %v361, 0
        %v390 = vsel %vm379, %v362, 0
        %v393 = vsel %vm379, %v363, 0
        %v396 = vsel %vm379, %v364, 0
        %v399 = vsel %vm379, %v365, 0
        %v402 = vsel %vm379, %v366, 0
        %404 = vmatprep.subr.bf16.mxu0 0
        %405 = vmatpush1.bf16.msra.mxu0 %v375
        %406 = vmatprep.subr.bf16.mxu0 0
        %407 = vmatpush1.bf16.msra.mxu0 %v376
        %408 = vmatprep.subr.bf16.mxu0 0
        %409 = vmatpush1.bf16.msra.mxu0 0
        %410 = vmatprep.subr.bf16.mxu0 0
        %411 = vmatpush1.bf16.msra.mxu0 0
        %412 = vmatprep.subr.bf16.mxu0 0
        %413 = vmatpush1.bf16.msra.mxu0 0
        %414 = vmatprep.subr.bf16.mxu0 0
        %415 = vmatpush1.bf16.msra.mxu0 0
        %416 = vmatprep.subr.bf16.mxu0 0
        %417 = vmatpush1.bf16.msra.mxu0 0
        %418 = vmatprep.subr.bf16.mxu0 0
        %419 = vmatpush1.bf16.msra.mxu0 0
        %420 = vmatprep.subr.bf16.mxu0 0
        %421 = vmatpush1.bf16.msra.mxu0 0
        %422 = vmatprep.subr.bf16.mxu0 0
        %423 = vmatpush1.bf16.msra.mxu0 0
        %424 = vmatprep.subr.bf16.mxu0 0
        %425 = vmatpush1.bf16.msra.mxu0 0
        %426 = vmatprep.subr.bf16.mxu0 0
        %427 = vmatpush1.bf16.msra.mxu0 0
        %428 = vmatprep.subr.bf16.mxu0 0
        %429 = vmatpush1.bf16.msra.mxu0 0
        %430 = vmatprep.subr.bf16.mxu0 0
        %431 = vmatpush1.bf16.msra.mxu0 0
        %432 = vmatprep.subr.bf16.mxu0 0
        %433 = vmatpush1.bf16.msra.mxu0 0
        %434 = vmatprep.subr.bf16.mxu0 0
        %435 = vmatpush1.bf16.msra.mxu0 0
        %436 = vmatprep.mubr.bf16.mxu0 0
        %437 = vmatmul.mubr.bf16.gmra.mrb[0].mxu0 %v381
        %v438 = vpop.f32.mrb[0].mxu0
        %v439 = vadd.f32 %v325, %v438
        %v440 = vpop.f32.mrb[0].mxu0
        %v441 = vpop.f32.mrb[0].mxu0
        %v442 = vadd.f32 %v325, %v441
        %v443 = vpop.f32.mrb[0].mxu0
        %444 = vmatprep.mubr.bf16.mxu0 0
        %445 = vmatmul.mubr.bf16.gmra.mrb[0].mxu0 %v384
        %v446 = vpop.f32.mrb[0].mxu0
        %v447 = vadd.f32 %v325, %v446
        %v448 = vpop.f32.mrb[0].mxu0
        %v449 = vpop.f32.mrb[0].mxu0
        %v450 = vadd.f32 %v325, %v449
        %v451 = vpop.f32.mrb[0].mxu0
        %452 = vmatprep.mubr.bf16.mxu0 0
        %453 = vmatmul.mubr.bf16.gmra.mrb[0].mxu0 %v387
        %v454 = vpop.f32.mrb[0].mxu0
        %v455 = vadd.f32 %v325, %v454
        %v456 = vpop.f32.mrb[0].mxu0
        %v457 = vpop.f32.mrb[0].mxu0
        %v458 = vadd.f32 %v325, %v457
        %v459 = vpop.f32.mrb[0].mxu0
        %460 = vmatprep.mubr.bf16.mxu0 0
        %461 = vmatmul.mubr.bf16.gmra.mrb[0].mxu0 %v390
        %v462 = vpop.f32.mrb[0].mxu0
        %v463 = vadd.f32 %v325, %v462
        %v464 = vpop.f32.mrb[0].mxu0
        %v465 = vpop.f32.mrb[0].mxu0
        %v466 = vadd.f32 %v325, %v465
        %v467 = vpop.f32.mrb[0].mxu0
        %468 = vmatprep.mubr.bf16.mxu0 0
        %469 = vmatmul.mubr.bf16.gmra.mrb[0].mxu0 %v393
        %v470 = vpop.f32.mrb[0].mxu0
        %v471 = vadd.f32 %v325, %v470
        %v472 = vpop.f32.mrb[0].mxu0
        %v473 = vpop.f32.mrb[0].mxu0
        %v474 = vadd.f32 %v325, %v473
        %v475 = vpop.f32.mrb[0].mxu0
        %476 = vmatprep.mubr.bf16.mxu0 0
        %477 = vmatmul.mubr.bf16.gmra.mrb[0].mxu0 %v396
        %v478 = vpop.f32.mrb[0].mxu0
        %v479 = vadd.f32 %v325, %v478
        %v480 = vpop.f32.mrb[0].mxu0
        %v481 = vpop.f32.mrb[0].mxu0
        %v482 = vadd.f32 %v325, %v481
        %v483 = vpop.f32.mrb[0].mxu0
        %484 = vmatprep.mubr.bf16.mxu0 0
        %485 = vmatmul.mubr.bf16.gmra.mrb[0].mxu0 %v399
        %v486 = vpop.f32.mrb[0].mxu0
        %v487 = vadd.f32 %v325, %v486
        %v488 = vpop.f32.mrb[0].mxu0
        %v489 = vpop.f32.mrb[0].mxu0
        %v490 = vadd.f32 %v325, %v489
        %v491 = vpop.f32.mrb[0].mxu0
        %492 = vmatprep.mubr.bf16.mxu0 0
        %493 = vmatmul.mubr.bf16.gmra.mrb[0].mxu0 %v402
        %v494 = vpop.f32.mrb[0].mxu0
        %v495 = vadd.f32 %v325, %v494
        %v496 = vpop.f32.mrb[0].mxu0
        %v497 = vpop.f32.mrb[0].mxu0
        %v498 = vadd.f32 %v325, %v497
        %v499 = vpop.f32.mrb[0].mxu0
        %500 = vdwg.mxu0
        %v501 = vmax.f32 %v439, 0.0
        %v502 = vmax.f32 %v442, 0.0
        %v503 = vmax.f32 %v447, 0.0
        %v504 = vmax.f32 %v450, 0.0
        %v505 = vmax.f32 %v455, 0.0
        %v506 = vmax.f32 %v458, 0.0
        %v507 = vmax.f32 %v463, 0.0
        %v508 = vmax.f32 %v466, 0.0
        %v509 = vmax.f32 %v471, 0.0
        %v510 = vmax.f32 %v474, 0.0
        %v511 = vmax.f32 %v479, 0.0
        %v512 = vmax.f32 %v482, 0.0
        %v513 = vmax.f32 %v487, 0.0
        %v514 = vmax.f32 %v490, 0.0
        %v515 = vmax.f32 %v495, 0.0
        %v516 = vmax.f32 %v498, 0.0
        %v517 = vpack.c.bf16 %v502, %v501
        %v518 = vpack.c.bf16 %v504, %v503
        %v519 = vpack.c.bf16 %v506, %v505
        %v520 = vpack.c.bf16 %v508, %v507
        %v521 = vpack.c.bf16 %v510, %v509
        %v522 = vpack.c.bf16 %v512, %v511
        %v523 = vpack.c.bf16 %v514, %v513
        %v524 = vpack.c.bf16 %v516, %v515
        %v525 = vld [vmem:[%s3] sm:$0xf]
        %v526 = vld [vmem:[%s3 + $0x4] sm:$0xf]
        %v527 = vld [vmem:[%s4] sm:$0x1]
        %v529 = vlaneseq
        %v530 = vshrl.u32 %v529, 7
        %v531 = vsub.s32 0, %v530
        %v532 = vrot.slane %v527, %v531
        %v536 = vunpack.c.l.b16 %v525
        %v537 = vunpack.c.l.b16 %v526
        %v538 = vpack.c.b16 %v537, %v536
        %vm540 = vcmask 130048
        %v542 = vsel %vm540, %v517, 0
        %v545 = vsel %vm540, %v518, 0
        %v548 = vsel %vm540, %v519, 0
        %v551 = vsel %vm540, %v520, 0
        %v554 = vsel %vm540, %v521, 0
        %v557 = vsel %vm540, %v522, 0
        %v560 = vsel %vm540, %v523, 0
        %v563 = vsel %vm540, %v524, 0
        %565 = vmatprep.subr.bf16.mxu0 0
        %566 = vmatpush1.bf16.msra.mxu0 %v538
        %567 = vmatprep.subr.bf16.mxu0 0
        %568 = vmatpush1.bf16.msra.mxu0 0
        %569 = vmatprep.subr.bf16.mxu0 0
        %570 = vmatpush1.bf16.msra.mxu0 0
        %571 = vmatprep.subr.bf16.mxu0 0
        %572 = vmatpush1.bf16.msra.mxu0 0
        %573 = vmatprep.subr.bf16.mxu0 0
        %574 = vmatpush1.bf16.msra.mxu0 0
        %575 = vmatprep.subr.bf16.mxu0 0
        %576 = vmatpush1.bf16.msra.mxu0 0
        %577 = vmatprep.subr.bf16.mxu0 0
        %578 = vmatpush1.bf16.msra.mxu0 0
        %579 = vmatprep.subr.bf16.mxu0 0
        %580 = vmatpush1.bf16.msra.mxu0 0
        %581 = vmatprep.subr.bf16.mxu0 0
        %582 = vmatpush1.bf16.msra.mxu0 0
        %583 = vmatprep.subr.bf16.mxu0 0
        %584 = vmatpush1.bf16.msra.mxu0 0
        %585 = vmatprep.subr.bf16.mxu0 0
        %586 = vmatpush1.bf16.msra.mxu0 0
        %587 = vmatprep.subr.bf16.mxu0 0
        %588 = vmatpush1.bf16.msra.mxu0 0
        %589 = vmatprep.subr.bf16.mxu0 0
        %590 = vmatpush1.bf16.msra.mxu0 0
        %591 = vmatprep.subr.bf16.mxu0 0
        %592 = vmatpush1.bf16.msra.mxu0 0
        %593 = vmatprep.subr.bf16.mxu0 0
        %594 = vmatpush1.bf16.msra.mxu0 0
        %595 = vmatprep.subr.bf16.mxu0 0
        %596 = vmatpush1.bf16.msra.mxu0 0
        %597 = vmatprep.mubr.bf16.mxu0 0
        %598 = vmatmul.mubr.bf16.gmra.mrb[0].mxu0 %v542
        %v599 = vpop.f32.mrb[0].mxu0
        %v600 = vadd.f32 %v532, %v599
        %v601 = vpop.f32.mrb[0].mxu0
        %v602 = vpop.f32.mrb[0].mxu0
        %v603 = vadd.f32 %v532, %v602
        %v604 = vpop.f32.mrb[0].mxu0
        %605 = vmatprep.mubr.bf16.mxu0 0
        %606 = vmatmul.mubr.bf16.gmra.mrb[0].mxu0 %v545
        %v607 = vpop.f32.mrb[0].mxu0
        %v608 = vadd.f32 %v532, %v607
        %v609 = vpop.f32.mrb[0].mxu0
        %v610 = vpop.f32.mrb[0].mxu0
        %v611 = vadd.f32 %v532, %v610
        %v612 = vpop.f32.mrb[0].mxu0
        %613 = vmatprep.mubr.bf16.mxu0 0
        %614 = vmatmul.mubr.bf16.gmra.mrb[0].mxu0 %v548
        %v615 = vpop.f32.mrb[0].mxu0
        %v616 = vadd.f32 %v532, %v615
        %v617 = vpop.f32.mrb[0].mxu0
        %v618 = vpop.f32.mrb[0].mxu0
        %v619 = vadd.f32 %v532, %v618
        %v620 = vpop.f32.mrb[0].mxu0
        %621 = vmatprep.mubr.bf16.mxu0 0
        %622 = vmatmul.mubr.bf16.gmra.mrb[0].mxu0 %v551
        %v623 = vpop.f32.mrb[0].mxu0
        %v624 = vadd.f32 %v532, %v623
        %v625 = vpop.f32.mrb[0].mxu0
        %v626 = vpop.f32.mrb[0].mxu0
        %v627 = vadd.f32 %v532, %v626
        %v628 = vpop.f32.mrb[0].mxu0
        %629 = vmatprep.mubr.bf16.mxu0 0
        %630 = vmatmul.mubr.bf16.gmra.mrb[0].mxu0 %v554
        %v631 = vpop.f32.mrb[0].mxu0
        %v632 = vadd.f32 %v532, %v631
        %v633 = vpop.f32.mrb[0].mxu0
        %v634 = vpop.f32.mrb[0].mxu0
        %v635 = vadd.f32 %v532, %v634
        %v636 = vpop.f32.mrb[0].mxu0
        %637 = vmatprep.mubr.bf16.mxu0 0
        %638 = vmatmul.mubr.bf16.gmra.mrb[0].mxu0 %v557
        %v639 = vpop.f32.mrb[0].mxu0
        %v640 = vadd.f32 %v532, %v639
        %v641 = vpop.f32.mrb[0].mxu0
        %v642 = vpop.f32.mrb[0].mxu0
        %v643 = vadd.f32 %v532, %v642
        %v644 = vpop.f32.mrb[0].mxu0
        %645 = vmatprep.mubr.bf16.mxu0 0
        %646 = vmatmul.mubr.bf16.gmra.mrb[0].mxu0 %v560
        %v647 = vpop.f32.mrb[0].mxu0
        %v648 = vadd.f32 %v532, %v647
        %v649 = vpop.f32.mrb[0].mxu0
        %v650 = vpop.f32.mrb[0].mxu0
        %v651 = vadd.f32 %v532, %v650
        %v652 = vpop.f32.mrb[0].mxu0
        %653 = vmatprep.mubr.bf16.mxu0 0
        %654 = vmatmul.mubr.bf16.gmra.mrb[0].mxu0 %v563
        %v655 = vpop.f32.mrb[0].mxu0
        %v656 = vadd.f32 %v532, %v655
        %v657 = vpop.f32.mrb[0].mxu0
        %v658 = vpop.f32.mrb[0].mxu0
        %v659 = vadd.f32 %v532, %v658
        %v660 = vpop.f32.mrb[0].mxu0
        %661 = vdwg.mxu0
        %v662 = vmax.f32 %v600, 0.0
        %v663 = vmax.f32 %v603, 0.0
        %v664 = vmax.f32 %v608, 0.0
        %v665 = vmax.f32 %v611, 0.0
        %v666 = vmax.f32 %v616, 0.0
        %v667 = vmax.f32 %v619, 0.0
        %v668 = vmax.f32 %v624, 0.0
        %v669 = vmax.f32 %v627, 0.0
        %v670 = vmax.f32 %v632, 0.0
        %v671 = vmax.f32 %v635, 0.0
        %v672 = vmax.f32 %v640, 0.0
        %v673 = vmax.f32 %v643, 0.0
        %v674 = vmax.f32 %v648, 0.0
        %v675 = vmax.f32 %v651, 0.0
        %v676 = vmax.f32 %v656, 0.0
        %v677 = vmax.f32 %v659, 0.0
        %v678 = vld [vmem:[%s5] sm:$0x1]
        %v679 = vpack.c.bf16 %v663, %v662
        %v680 = vpack.c.bf16 %v665, %v664
        %v681 = vpack.c.bf16 %v667, %v666
        %v682 = vpack.c.bf16 %v669, %v668
        %v683 = vpack.c.bf16 %v671, %v670
        %v684 = vpack.c.bf16 %v673, %v672
        %v685 = vpack.c.bf16 %v675, %v674
        %v686 = vpack.c.bf16 %v677, %v676
        %s687 = sld [smem:[#allocation2]]
        %v688 = vstv %s687
        %vm689 = vcmask 64512
        %v691 = vsel %vm689, %v678, 0
        %v694 = vsel %vm689, %v679, 0
        %v697 = vsel %vm689, %v680, 0
        %v700 = vsel %vm689, %v681, 0
        %v703 = vsel %vm689, %v682, 0
        %v706 = vsel %vm689, %v683, 0
        %v709 = vsel %vm689, %v684, 0
        %v712 = vsel %vm689, %v685, 0
        %v715 = vsel %vm689, %v686, 0
        %717 = vmatprep.subr.bf16.mxu0 0
        %718 = vmatpush1.bf16.xpose.msra.mxu0 %v694
        %719 = vmatprep.subr.bf16.mxu0 0
        %720 = vmatpush1.bf16.xpose.msra.mxu0 %v697
        %721 = vmatprep.subr.bf16.mxu0 0
        %722 = vmatpush1.bf16.xpose.msra.mxu0 %v700
        %723 = vmatprep.subr.bf16.mxu0 0
        %724 = vmatpush1.bf16.xpose.msra.mxu0 %v703
        %725 = vmatprep.subr.bf16.mxu0 0
        %726 = vmatpush1.bf16.xpose.msra.mxu0 %v706
        %727 = vmatprep.subr.bf16.mxu0 0
        %728 = vmatpush1.bf16.xpose.msra.mxu0 %v709
        %729 = vmatprep.subr.bf16.mxu0 0
        %730 = vmatpush1.bf16.xpose.msra.mxu0 %v712
        %731 = vmatprep.subr.bf16.mxu0 0
        %732 = vmatpush1.bf16.xpose.msra.mxu0 %v715
        %733 = vmatprep.subr.bf16.mxu0 0
        %734 = vmatpush1.bf16.xpose.msra.mxu0 0
        %735 = vmatprep.subr.bf16.mxu0 0
        %736 = vmatpush1.bf16.xpose.msra.mxu0 0
        %737 = vmatprep.subr.bf16.mxu0 0
        %738 = vmatpush1.bf16.xpose.msra.mxu0 0
        %739 = vmatprep.subr.bf16.mxu0 0
        %740 = vmatpush1.bf16.xpose.msra.mxu0 0
        %741 = vmatprep.subr.bf16.mxu0 0
        %742 = vmatpush1.bf16.xpose.msra.mxu0 0
        %743 = vmatprep.subr.bf16.mxu0 0
        %744 = vmatpush1.bf16.xpose.msra.mxu0 0
        %745 = vmatprep.subr.bf16.mxu0 0
        %746 = vmatpush1.bf16.xpose.msra.mxu0 0
        %747 = vmatprep.subr.bf16.mxu0 0
        %748 = vmatpush1.bf16.xpose.msra.mxu0 0
        %749 = vmatprep.mubr.bf16.mxu0 0
        %750 = vmatmul.mubr.bf16.gmra.mrb[0].mxu0 %v691
        %v751 = vpop.f32.mrb[0].mxu0
        %v752 = vadd.f32 %v688, %v751
        %v753 = vpop.f32.mrb[0].mxu0
        %v754 = vpop.f32.mrb[0].mxu0
        %v755 = vpop.f32.mrb[0].mxu0
        %756 = vdwg.mxu0
        %757 = vst [vmem:[%s284] sm:$0x1] %v752
        %s758 = sand.u32 %s182, 1
        %s759 = scalar_lea.sflag [#allocation4], %s758
        %s760 = sand.u32 %s182, 1
        %s761 = scalar_lea.vmem [#allocation3], %s760
        // Predicated region
        $region49: #{decoder_forward.1} parent=47 // pred_check
          %p762 = pneg %p192
        $region50: #{decoder_forward.1} parent=47 // pred_check_branch
          %764 = sbr.rel (%p762) target = $region52
        $region51: #{decoder_forward.1} parent=47 // pred_region
          %s766 = ssub.s32 16, 16
          %767 = vsyncadd %s759, %s766
          %s768 = smul.addr %s22, 16
          %s769 = scalar_lea.hbm %s7, %s768
          %s771 = sshll.u32 %s761, 4
          %s772 = int_to_ptr.vmem [resolvable:$true] %s771
          %774 = dma.vmem_to_hbm [thread:$0]  %s772, 16, %s769, %s759
        $region52: #{decoder_forward.1} parent=47 // pred_fallthru
          _
      $region48: #{decoder_forward.1} parent=5 // pred_fallthru
        _
      %p775 = scmp.le.s32.totalorder 2, %s17
      // Predicated region
      $region53: #{decoder_forward.1} parent=5 // pred_check
        %p776 = pneg %p775
      $region54: #{decoder_forward.1} parent=5 // pred_check_branch
        %778 = sbr.rel (%p776) target = $region56
      $region55: #{decoder_forward.1} parent=5 // pred_region
        %s779 = ssub.s32 %s17, 2
        // Predicated region
        $region57: #{decoder_forward.1} parent=55 // pred_check
          %p780 = pneg %p198
        $region58: #{decoder_forward.1} parent=55 // pred_check_branch
          %782 = sbr.rel (%p780) target = $region60
        $region59: #{decoder_forward.1} parent=55 // pred_region
          %s783 = sand.u32 %s183, 1
          %s784 = scalar_lea.sflag [#allocation4], %s783
          %s785 = sand.u32 %s183, 1
          %s786 = scalar_lea.vmem [#allocation3], %s785
          %787 = dma.done %s784, 16
        $region60: #{decoder_forward.1} parent=55 // pred_fallthru
          _
      $region56: #{decoder_forward.1} parent=5 // pred_fallthru
        _
    $region6: #{decoder_forward.1} parent=1 // loop_footer
      %s21 = sadd.s32 1, %s17
    $region7: #{decoder_forward.1} parent=1 // loop_footer_branch
      %16 = sbr.rel target = $region3
    $region8: #{decoder_forward.1} parent=1 // loop_exit
      _
    %788 = vsyncpa [#allocation4], 1
    %s789 = scalar_lea.sflag [#allocation4], 1
    %790 = vsyncpa %s789, 1

</llo_original>
